<compile_context>
chip_gen: v7x
topology: tpu7x:2x2x1
jax: 0.10.0
libtpu: 0.0.40
codegen_flags: <defaults>
</compile_context>

<pallas_src>
import jax
import jax.numpy as jnp
from jax.experimental import pallas as pl
from jax.experimental.pallas import tpu as pltpu


def _attention_kernel(h_ref, enc_ref, wT_ref, bv_ref, ctx_ref, attnw_ref):
    # h_ref:    (B, H)      last-layer hidden state
    # enc_ref:  (B, S, H)   encoder outputs
    # wT_ref:   (2H, H)     packed attn_weight.T  (rows 0..H-1 act on h,
    #                        rows H..2H-1 act on encoder_outputs)
    # bv_ref:   (2, H)      row 0 = bias, row 1 = v
    # ctx_ref:   (B, H)     output context
    # attnw_ref: (B, S)     output attention weights
    h = h_ref[...]                               # (B, H)
    enc = enc_ref[...]                           # (B, S, H)
    B, S, H = enc.shape

    # Zero-cost static sublane views into the packed operands (H % 8 == 0).
    w1t = wT_ref[:H, :]                          # (H, H): h @ w1t == h @ W1^T
    w2t = wT_ref[H:, :]                          # (H, H): e @ w2t == e @ W2^T
    b = bv_ref[0:1, :]                           # (1, H)
    v = bv_ref[1:2, :]                           # (1, H)

    # hidden projection: last_hidden @ W1^T + b  -> (B, H)
    hproj = jnp.dot(h, w1t, preferred_element_type=jnp.float32) + b

    # encoder projection: one (B*S, H) @ (H, H) MXU matmul when the reshape is
    # layout-preserving (S multiple of the 8-sublane f32 tile), else a
    # dot_general that never reshapes.
    if S % 8 == 0:
        eproj = jnp.dot(enc.reshape(B * S, H), w2t,
                        preferred_element_type=jnp.float32).reshape(B, S, H)
    else:
        eproj = jax.lax.dot_general(
            enc, w2t, dimension_numbers=(((2,), (0,)), ((), ())),
            preferred_element_type=jnp.float32)

    # energy = tanh(attn(cat(h, enc)))  -> (B, S, H); f32 on the EUP.
    energy = jnp.tanh(eproj + hproj[:, None, :])

    # attn_scores = v . energy over H (lane reduce) -> (B, S)
    scores = jnp.sum(energy * v[None, :, :], axis=-1)

    # softmax over the sequence axis (exact reciprocal keeps 1e-5 tolerance)
    m = jnp.max(scores, axis=-1, keepdims=True)
    ex = jnp.exp(scores - m)
    weights = ex * pl.reciprocal(jnp.sum(ex, axis=-1, keepdims=True),
                                 approx=False)                  # (B, S)

    # context = weights @ encoder_outputs, done on the VPU:
    # (B, S, 1) * (B, S, H) summed over S (sublane reduce) -> (B, H).
    ctx = jnp.sum(weights[:, :, None] * enc, axis=1)

    ctx_ref[...] = ctx.astype(ctx_ref.dtype)
    attnw_ref[...] = weights.astype(attnw_ref.dtype)


def attention_forward(hidden, encoder_outputs, attn_weight, attn_bias, v):
    """hidden: (L, B, H); encoder_outputs: (B, S, H);
    attn_weight: (H, 2H); attn_bias: (H,); v: (H,)."""
    last_hidden = hidden[-1]                       # (B, H)   (glue)
    B, S, H = encoder_outputs.shape

    # Pack small operands in the wrapper so the kernel sees 4 inputs, not 6:
    #   wT: (2H, H) == attn_weight.T  (no in-kernel transpose, one DMA)
    #   bv: (2, H)  row 0 = bias, row 1 = v
    wT = attn_weight.T
    bv = jnp.stack([attn_bias, v], axis=0)

    # Single grid step: the whole problem (a few KB) lives in VMEM.
    # TODO(synk): if this runs once per decoder step, batch T steps per call
    # (grid over T, enc index_map returning the same block) — at this size the
    # kernel is launch/DMA bound and that is the only multi-x lever.
    # Scale-up path (large S): tile S with an online softmax and budget the
    # (B, S_tile, H) block against v7x's 64 MiB VMEM (double-buffered).
    context, attn_weights = pl.pallas_call(
        _attention_kernel,
        out_shape=(
            jax.ShapeDtypeStruct((B, H), jnp.float32),
            jax.ShapeDtypeStruct((B, S), jnp.float32),
        ),
        grid_spec=pltpu.PrefetchScalarGridSpec(
            num_scalar_prefetch=0,
            grid=(1,),
            in_specs=[
                pl.BlockSpec((B, H), lambda i: (0, 0)),        # last_hidden
                pl.BlockSpec((B, S, H), lambda i: (0, 0, 0)),  # encoder_outputs
                pl.BlockSpec((2 * H, H), lambda i: (0, 0)),    # packed W^T
                pl.BlockSpec((2, H), lambda i: (0, 0)),        # packed [bias; v]
            ],
            out_specs=(
                pl.BlockSpec((B, H), lambda i: (0, 0)),        # context
                pl.BlockSpec((B, S), lambda i: (0, 0)),        # attn_weights
            ),
        ),
        compiler_params=pltpu.CompilerParams(
            dimension_semantics=("parallel",)),
    )(last_hidden, encoder_outputs, wT, bv)
    return context, attn_weights


def _reference(hidden, encoder_outputs, attn_weight, attn_bias, v):
    """Pure-JAX mirror of the PyTorch forward, for verification."""
    B, S, H = encoder_outputs.shape
    last_hidden = hidden[-1]                                    # (B, H)
    lh_exp = jnp.repeat(last_hidden[:, None, :], S, axis=1)     # (B, S, H)
    attn_input = jnp.concatenate([lh_exp, encoder_outputs], axis=2)  # (B, S, 2H)
    energy = jnp.tanh(attn_input @ attn_weight.T + attn_bias)   # (B, S, H)
    energy_t = jnp.swapaxes(energy, 1, 2)                       # (B, H, S)
    v_exp = jnp.broadcast_to(v, (B, H))[:, None, :]             # (B, 1, H)
    scores = jnp.squeeze(v_exp @ energy_t, axis=1)              # (B, S)
    weights = jax.nn.softmax(scores, axis=1)
    context = jnp.squeeze(weights[:, None, :] @ encoder_outputs, axis=1)
    return context, weights


if __name__ == "__main__":
    key = jax.random.PRNGKey(0)
    L, B, S, H = 2, 2, 8, 32   # num_lstm_layers, batch, seq_len, hidden_size

    k_h, k_e, k_w, k_b, k_v = jax.random.split(key, 5)
    hidden = jax.random.normal(k_h, (L, B, H), dtype=jnp.float32)
    encoder_outputs = jax.random.normal(k_e, (B, S, H), dtype=jnp.float32)

    # Deterministic parameter init mimicking nn.Linear / the module's v init.
    lin_bound = 1.0 / jnp.sqrt(jnp.float32(2 * H))
    attn_weight = jax.random.uniform(k_w, (H, 2 * H), jnp.float32,
                                     -lin_bound, lin_bound)
    attn_bias = jax.random.uniform(k_b, (H,), jnp.float32,
                                   -lin_bound, lin_bound)
    stdv = 1.0 / jnp.sqrt(jnp.float32(H))
    v = jax.random.uniform(k_v, (H,), jnp.float32, -stdv, stdv)

    ctx, attn_w = attention_forward(hidden, encoder_outputs,
                                    attn_weight, attn_bias, v)
    jax.block_until_ready((ctx, attn_w))

    ctx_ref, attn_w_ref = _reference(hidden, encoder_outputs,
                                     attn_weight, attn_bias, v)
    assert jnp.allclose(ctx, ctx_ref, atol=1e-5, rtol=1e-5)
    assert jnp.allclose(attn_w, attn_w_ref, atol=1e-5, rtol=1e-5)
    assert attn_w.shape == (B, S) and ctx.shape == (B, H)

    print("KERNEL_OK")
</pallas_src>

<mosaic_0001>
module attributes {stable_mosaic.version = 11 : i64} {
  func.func @_attention_kernel(%arg0: i32, %arg1: memref<2x32xf32, #tpu.memory_space<vmem>>, %arg2: memref<2x8x32xf32, #tpu.memory_space<vmem>>, %arg3: memref<64x32xf32, #tpu.memory_space<vmem>>, %arg4: memref<2x32xf32, #tpu.memory_space<vmem>>, %arg5: memref<2x32xf32, #tpu.memory_space<vmem>>, %arg6: memref<2x8xf32, #tpu.memory_space<vmem>>) attributes {dimension_semantics = [#tpu.dimension_semantics<parallel>], iteration_bounds = array<i64: 1>, scalar_prefetch = 0 : i64, scratch_operands = 0 : i64, tpu.core_type = #tpu.core_type<tc>, window_params = [{pipeline_mode = #tpu.pipeline_mode<synchronous>, transform_indices = @transform_0, window_bounds = array<i64: 2, 32>}, {pipeline_mode = #tpu.pipeline_mode<synchronous>, transform_indices = @transform_1, window_bounds = array<i64: 2, 8, 32>}, {pipeline_mode = #tpu.pipeline_mode<synchronous>, transform_indices = @transform_2, window_bounds = array<i64: 64, 32>}, {pipeline_mode = #tpu.pipeline_mode<synchronous>, transform_indices = @transform_3, window_bounds = array<i64: 2, 32>}, {pipeline_mode = #tpu.pipeline_mode<synchronous>, transform_indices = @transform_4, window_bounds = array<i64: 2, 32>}, {pipeline_mode = #tpu.pipeline_mode<synchronous>, transform_indices = @transform_5, window_bounds = array<i64: 2, 8>}]} {
    %c0 = arith.constant 0 : index
    %c0_0 = arith.constant 0 : index
    %0 = vector.load %arg1[%c0, %c0_0] : memref<2x32xf32, #tpu.memory_space<vmem>>, vector<2x32xf32>
    %c0_1 = arith.constant 0 : index
    %c0_2 = arith.constant 0 : index
    %c0_3 = arith.constant 0 : index
    %1 = vector.load %arg2[%c0_1, %c0_2, %c0_3] : memref<2x8x32xf32, #tpu.memory_space<vmem>>, vector<2x8x32xf32>
    %c0_4 = arith.constant 0 : index
    %c0_5 = arith.constant 0 : index
    %2 = vector.load %arg3[%c0_4, %c0_5] : memref<64x32xf32, #tpu.memory_space<vmem>>, vector<32x32xf32>
    %c32 = arith.constant 32 : index
    %c0_6 = arith.constant 0 : index
    %3 = vector.load %arg3[%c32, %c0_6] : memref<64x32xf32, #tpu.memory_space<vmem>>, vector<32x32xf32>
    %c0_7 = arith.constant 0 : index
    %c0_8 = arith.constant 0 : index
    %4 = vector.load %arg4[%c0_7, %c0_8] : memref<2x32xf32, #tpu.memory_space<vmem>>, vector<1x32xf32>
    %c1 = arith.constant 1 : index
    %c0_9 = arith.constant 0 : index
    %5 = vector.load %arg4[%c1, %c0_9] : memref<2x32xf32, #tpu.memory_space<vmem>>, vector<1x32xf32>
    %cst = arith.constant dense<0.000000e+00> : vector<2x32xf32>
    %6 = tpu.matmul %0, %2, %cst {dimension_numbers = #tpu.dot_dimension_numbers<[1], [0], [0], [1], [0, 0, 1, 1], [], []>} : vector<2x32xf32>, vector<32x32xf32>, vector<2x32xf32> -> vector<2x32xf32>
    %7 = vector.broadcast %4 : vector<1x32xf32> to vector<2x32xf32>
    %8 = arith.addf %6, %7 : vector<2x32xf32>
    %9 = vector.shape_cast %1 : vector<2x8x32xf32> to vector<16x32xf32>
    %cst_10 = arith.constant dense<0.000000e+00> : vector<16x32xf32>
    %10 = tpu.matmul %9, %3, %cst_10 {dimension_numbers = #tpu.dot_dimension_numbers<[1], [0], [0], [1], [0, 0, 1, 1], [], []>} : vector<16x32xf32>, vector<32x32xf32>, vector<16x32xf32> -> vector<16x32xf32>
    %11 = vector.shape_cast %10 : vector<16x32xf32> to vector<2x8x32xf32>
    %12 = vector.shape_cast %8 : vector<2x32xf32> to vector<2x1x32xf32>
    %13 = vector.broadcast %12 : vector<2x1x32xf32> to vector<2x8x32xf32>
    %14 = arith.addf %11, %13 : vector<2x8x32xf32>
    %15 = math.tanh %14 : vector<2x8x32xf32>
    %16 = vector.shape_cast %5 : vector<1x32xf32> to vector<1x1x32xf32>
    %17 = vector.broadcast %16 : vector<1x1x32xf32> to vector<2x8x32xf32>
    %18 = arith.mulf %15, %17 : vector<2x8x32xf32>
    %cst_11 = arith.constant dense<0.000000e+00> : vector<2x8xf32>
    %19 = vector.multi_reduction <add>, %18, %cst_11 [2] : vector<2x8x32xf32> to vector<2x8xf32>
    %cst_12 = arith.constant dense<0xFF800000> : vector<2xf32>
    %20 = vector.multi_reduction <maximumf>, %19, %cst_12 [1] : vector<2x8xf32> to vector<2xf32>
    %21 = vector.shape_cast %20 : vector<2xf32> to vector<2x1xf32>
    %22 = vector.broadcast %21 : vector<2x1xf32> to vector<2x8xf32>
    %23 = arith.subf %19, %22 : vector<2x8xf32>
    %24 = math.exp %23 : vector<2x8xf32>
    %cst_13 = arith.constant dense<0.000000e+00> : vector<2xf32>
    %25 = vector.multi_reduction <add>, %24, %cst_13 [1] : vector<2x8xf32> to vector<2xf32>
    %26 = vector.shape_cast %25 : vector<2xf32> to vector<2x1xf32>
    %27 = tpu.reciprocal %26 : vector<2x1xf32> -> vector<2x1xf32>
    %28 = vector.broadcast %27 : vector<2x1xf32> to vector<2x8xf32>
    %29 = arith.mulf %24, %28 : vector<2x8xf32>
    %30 = vector.shape_cast %29 : vector<2x8xf32> to vector<2x8x1xf32>
    %31 = vector.broadcast %30 : vector<2x8x1xf32> to vector<2x8x32xf32>
    %32 = arith.mulf %31, %1 : vector<2x8x32xf32>
    %cst_14 = arith.constant dense<0.000000e+00> : vector<2x32xf32>
    %33 = vector.multi_reduction <add>, %32, %cst_14 [1] : vector<2x8x32xf32> to vector<2x32xf32>
    %c0_15 = arith.constant 0 : index
    %c0_16 = arith.constant 0 : index
    %34 = vector.load %arg5[%c0_15, %c0_16] : memref<2x32xf32, #tpu.memory_space<vmem>>, vector<2x32xf32>
    tpu.vector_store %arg5[%c0_15, %c0_16], %33 {strides = array<i32>} : memref<2x32xf32, #tpu.memory_space<vmem>>, vector<2x32xf32>,
    %c0_17 = arith.constant 0 : index
    %c0_18 = arith.constant 0 : index
    %35 = vector.load %arg6[%c0_17, %c0_18] : memref<2x8xf32, #tpu.memory_space<vmem>>, vector<2x8xf32>
    tpu.vector_store %arg6[%c0_17, %c0_18], %29 {strides = array<i32>} : memref<2x8xf32, #tpu.memory_space<vmem>>, vector<2x8xf32>,
    return
  }
  func.func @transform_0(%arg0: i32) -> (i32, i32) {
    %c0_i32 = arith.constant 0 : i32
    %c0_i32_0 = arith.constant 0 : i32
    %c0_i32_1 = arith.constant 0 : i32
    return %c0_i32, %c0_i32_0 : i32, i32
  }
  func.func @transform_1(%arg0: i32) -> (i32, i32, i32) {
    %c0_i32 = arith.constant 0 : i32
    %c0_i32_0 = arith.constant 0 : i32
    %c0_i32_1 = arith.constant 0 : i32
    %c0_i32_2 = arith.constant 0 : i32
    return %c0_i32, %c0_i32_0, %c0_i32_1 : i32, i32, i32
  }
  func.func @transform_2(%arg0: i32) -> (i32, i32) {
    %c0_i32 = arith.constant 0 : i32
    %c0_i32_0 = arith.constant 0 : i32
    %c0_i32_1 = arith.constant 0 : i32
    return %c0_i32, %c0_i32_0 : i32, i32
  }
  func.func @transform_3(%arg0: i32) -> (i32, i32) {
    %c0_i32 = arith.constant 0 : i32
    %c0_i32_0 = arith.constant 0 : i32
    %c0_i32_1 = arith.constant 0 : i32
    return %c0_i32, %c0_i32_0 : i32, i32
  }
  func.func @transform_4(%arg0: i32) -> (i32, i32) {
    %c0_i32 = arith.constant 0 : i32
    %c0_i32_0 = arith.constant 0 : i32
    %c0_i32_1 = arith.constant 0 : i32
    return %c0_i32, %c0_i32_0 : i32, i32
  }
  func.func @transform_5(%arg0: i32) -> (i32, i32) {
    %c0_i32 = arith.constant 0 : i32
    %c0_i32_0 = arith.constant 0 : i32
    %c0_i32_1 = arith.constant 0 : i32
    return %c0_i32, %c0_i32_0 : i32, i32
  }
}

</mosaic_0001>

<llo_original>
// kernel: tpu_custom_call.1
$region0: #{tpu_custom_call.1}
  #allocation0 [shape = 'u32[]', space=smem, size = 0x4, offset = 0x4, fixed_abs, tag = 'smem constant byte address 0x4 - core index']
  #allocation1 [shape = 'u32[144,128]{1,0:T(1,128)}', space=vmem, size = 0x12000, scoped, tag = 'internal scratch']
  %s0 = inlined_call_operand.vmem [shape: f32[2,32], index: 0, kind: input, shape index: {}]
  %s1 = inlined_call_operand.vmem [shape: f32[2,8,32], index: 1, kind: input, shape index: {}]
  %s2 = inlined_call_operand.vmem [shape: f32[64,32], index: 2, kind: input, shape index: {}]
  %s3 = inlined_call_operand.vmem [shape: f32[2,32], index: 3, kind: input, shape index: {}]
  %s4 = inlined_call_operand.hbm [shape: f32[2,32], index: 4, kind: output, shape index: {0}]
  %s5 = inlined_call_operand.hbm [shape: f32[2,8], index: 5, kind: output, shape index: {1}]
  %6 = xla_tuple %s4, %s5
  %s7 = sld [smem:[#allocation0]]
  $region34: #{tpu_custom_call.1} parent=0
    _
  %s9 = ssub.s32 1, %s7
  %s10 = scalar_select 0, %s9, %s7
  $region1: #{tpu_custom_call.1} parent=0
    #allocation2 [shape = 'u8[1024]{0}', space=vmem, size = 0x400, scoped, tag = 'output window, operand 0, single buffered']
    #allocation3 [shape = 's32[1]{0}', space=sflag, size = 0x4, scoped, tag = 'scoped memory for tpu_custom_call.1']
    #allocation4 [shape = 'u8[1024]{0}', space=vmem, size = 0x400, scoped, tag = 'output window, operand 1, single buffered']
    #allocation5 [shape = 's32[1]{0}', space=sflag, size = 0x4, scoped, tag = 'scoped memory for tpu_custom_call.1']
    %11 = vsyncpa [#allocation3], 0
    %12 = vsyncpa [#allocation5], 0
    // Predicated region
    $region2: #{tpu_custom_call.1} parent=1 // pred_check
      _
    $region3: #{tpu_custom_call.1} parent=1 // pred_check_branch
      %14 = sbr.rel (0) target = $region5
    $region4: #{tpu_custom_call.1} parent=1 // pred_region
      _
    $region5: #{tpu_custom_call.1} parent=1 // pred_fallthru
      _
    // Predicated region
    $region6: #{tpu_custom_call.1} parent=1 // pred_check
      _
    $region7: #{tpu_custom_call.1} parent=1 // pred_check_branch
      %16 = sbr.rel (0) target = $region9
    $region8: #{tpu_custom_call.1} parent=1 // pred_region
      _
    $region9: #{tpu_custom_call.1} parent=1 // pred_fallthru
      _
    // Predicated region
    $region10: #{tpu_custom_call.1} parent=1 // pred_check
      _
    $region11: #{tpu_custom_call.1} parent=1 // pred_check_branch
      %18 = sbr.rel (0) target = $region13
    $region12: #{tpu_custom_call.1} parent=1 // pred_region
      _
    $region13: #{tpu_custom_call.1} parent=1 // pred_fallthru
      _
    // Predicated region
    $region14: #{tpu_custom_call.1} parent=1 // pred_check
      _
    $region15: #{tpu_custom_call.1} parent=1 // pred_check_branch
      %20 = sbr.rel (0) target = $region17
    $region16: #{tpu_custom_call.1} parent=1 // pred_region
      _
    $region17: #{tpu_custom_call.1} parent=1 // pred_fallthru
      _
    %v21 = vld [vmem:[%s0] sm:$0x3]
    %v22 = vld [vmem:[%s1] sm:$0xff]
    %v23 = vld [vmem:[%s1 + $0x8] sm:$0xff]
    %v24 = vld [vmem:[%s2] sm:$0xff]
    %v25 = vld [vmem:[%s2 + $0x8] sm:$0xff]
    %v26 = vld [vmem:[%s2 + $0x10] sm:$0xff]
    %v27 = vld [vmem:[%s2 + $0x18] sm:$0xff]
    %v28 = vld [vmem:[%s2 + $0x20] sm:$0xff]
    %v29 = vld [vmem:[%s2 + $0x28] sm:$0xff]
    %v30 = vld [vmem:[%s2 + $0x30] sm:$0xff]
    %v31 = vld [vmem:[%s2 + $0x38] sm:$0xff]
    %v32 = vld [vmem:[%s3] sm:$0x1]
    %v33 = vld [vmem:[%s3 + $0x1] sm:$0x1]
    %v34 = vlaneseq
    %v35 = vshrl.u32 %v34, 7
    %v36 = vsub.s32 0, %v35
    %v37 = vrot.slane %v32, %v36
    %vm38 = vcmask 261120
    %v40 = vsel %vm38, %v21, 0
    %42 = vmatprep.subr.mxu0 0.0
    %43 = vmatpush1.msra.mxu0 %v24
    %44 = vmatprep.subr.mxu0 0.0
    %45 = vmatpush1.msra.mxu0 %v25
    %46 = vmatprep.subr.mxu0 0.0
    %47 = vmatpush1.msra.mxu0 %v26
    %48 = vmatprep.subr.mxu0 0.0
    %49 = vmatpush1.msra.mxu0 %v27
    %50 = vmatprep.subr.mxu0 0.0
    %51 = vmatpush1.msra.mxu0 0.0
    %52 = vmatprep.subr.mxu0 0.0
    %53 = vmatpush1.msra.mxu0 0.0
    %54 = vmatprep.subr.mxu0 0.0
    %55 = vmatpush1.msra.mxu0 0.0
    %56 = vmatprep.subr.mxu0 0.0
    %57 = vmatpush1.msra.mxu0 0.0
    %58 = vmatprep.subr.mxu0 0.0
    %59 = vmatpush1.msra.mxu0 0.0
    %60 = vmatprep.subr.mxu0 0.0
    %61 = vmatpush1.msra.mxu0 0.0
    %62 = vmatprep.subr.mxu0 0.0
    %63 = vmatpush1.msra.mxu0 0.0
    %64 = vmatprep.subr.mxu0 0.0
    %65 = vmatpush1.msra.mxu0 0.0
    %66 = vmatprep.subr.mxu0 0.0
    %67 = vmatpush1.msra.mxu0 0.0
    %68 = vmatprep.subr.mxu0 0.0
    %69 = vmatpush1.msra.mxu0 0.0
    %70 = vmatprep.subr.mxu0 0.0
    %71 = vmatpush1.msra.mxu0 0.0
    %72 = vmatprep.subr.mxu0 0.0
    %73 = vmatpush1.msra.mxu0 0.0
    %74 = vmatprep.subr.mxu0 0.0
    %75 = vmatpush1.msra.mxu0 0.0
    %76 = vmatprep.subr.mxu0 0.0
    %77 = vmatpush1.msra.mxu0 0.0
    %78 = vmatprep.subr.mxu0 0.0
    %79 = vmatpush1.msra.mxu0 0.0
    %80 = vmatprep.subr.mxu0 0.0
    %81 = vmatpush1.msra.mxu0 0.0
    %82 = vmatprep.subr.mxu0 0.0
    %83 = vmatpush1.msra.mxu0 0.0
    %84 = vmatprep.subr.mxu0 0.0
    %85 = vmatpush1.msra.mxu0 0.0
    %86 = vmatprep.subr.mxu0 0.0
    %87 = vmatpush1.msra.mxu0 0.0
    %88 = vmatprep.subr.mxu0 0.0
    %89 = vmatpush1.msra.mxu0 0.0
    %90 = vmatprep.subr.mxu0 0.0
    %91 = vmatpush1.msra.mxu0 0.0
    %92 = vmatprep.subr.mxu0 0.0
    %93 = vmatpush1.msra.mxu0 0.0
    %94 = vmatprep.subr.mxu0 0.0
    %95 = vmatpush1.msra.mxu0 0.0
    %96 = vmatprep.subr.mxu0 0.0
    %97 = vmatpush1.msra.mxu0 0.0
    %98 = vmatprep.subr.mxu0 0.0
    %99 = vmatpush1.msra.mxu0 0.0
    %100 = vmatprep.subr.mxu0 0.0
    %101 = vmatpush1.msra.mxu0 0.0
    %102 = vmatprep.subr.mxu0 0.0
    %103 = vmatpush1.msra.mxu0 0.0
    %104 = vmatprep.subr.mxu0 0.0
    %105 = vmatpush1.msra.mxu0 0.0
    %106 = vmatprep.mubr.f32.mxu0 0.0
    %107 = vmatmul.mubr.f32.gmra.mrb[0].mxu0 %v40
    %v108 = vpop.f32.mrb[0].mxu0
    %v109 = vadd.f32 %v37, %v108
    %v110 = vpop.f32.mrb[0].mxu0
    %111 = vdwg.mxu0
    %v113 = vsel %vm38, %v22, 0
    %v116 = vsel %vm38, %v23, 0
    %118 = vmatprep.subr.mxu0 0.0
    %119 = vmatpush1.msra.mxu0 %v28
    %120 = vmatprep.subr.mxu0 0.0
    %121 = vmatpush1.msra.mxu0 %v29
    %122 = vmatprep.subr.mxu0 0.0
    %123 = vmatpush1.msra.mxu0 %v30
    %124 = vmatprep.subr.mxu0 0.0
    %125 = vmatpush1.msra.mxu0 %v31
    %126 = vmatprep.subr.mxu0 0.0
    %127 = vmatpush1.msra.mxu0 0.0
    %128 = vmatprep.subr.mxu0 0.0
    %129 = vmatpush1.msra.mxu0 0.0
    %130 = vmatprep.subr.mxu0 0.0
    %131 = vmatpush1.msra.mxu0 0.0
    %132 = vmatprep.subr.mxu0 0.0
    %133 = vmatpush1.msra.mxu0 0.0
    %134 = vmatprep.subr.mxu0 0.0
    %135 = vmatpush1.msra.mxu0 0.0
    %136 = vmatprep.subr.mxu0 0.0
    %137 = vmatpush1.msra.mxu0 0.0
    %138 = vmatprep.subr.mxu0 0.0
    %139 = vmatpush1.msra.mxu0 0.0
    %140 = vmatprep.subr.mxu0 0.0
    %141 = vmatpush1.msra.mxu0 0.0
    %142 = vmatprep.subr.mxu0 0.0
    %143 = vmatpush1.msra.mxu0 0.0
    %144 = vmatprep.subr.mxu0 0.0
    %145 = vmatpush1.msra.mxu0 0.0
    %146 = vmatprep.subr.mxu0 0.0
    %147 = vmatpush1.msra.mxu0 0.0
    %148 = vmatprep.subr.mxu0 0.0
    %149 = vmatpush1.msra.mxu0 0.0
    %150 = vmatprep.subr.mxu0 0.0
    %151 = vmatpush1.msra.mxu0 0.0
    %152 = vmatprep.subr.mxu0 0.0
    %153 = vmatpush1.msra.mxu0 0.0
    %154 = vmatprep.subr.mxu0 0.0
    %155 = vmatpush1.msra.mxu0 0.0
    %156 = vmatprep.subr.mxu0 0.0
    %157 = vmatpush1.msra.mxu0 0.0
    %158 = vmatprep.subr.mxu0 0.0
    %159 = vmatpush1.msra.mxu0 0.0
    %160 = vmatprep.subr.mxu0 0.0
    %161 = vmatpush1.msra.mxu0 0.0
    %162 = vmatprep.subr.mxu0 0.0
    %163 = vmatpush1.msra.mxu0 0.0
    %164 = vmatprep.subr.mxu0 0.0
    %165 = vmatpush1.msra.mxu0 0.0
    %166 = vmatprep.subr.mxu0 0.0
    %167 = vmatpush1.msra.mxu0 0.0
    %168 = vmatprep.subr.mxu0 0.0
    %169 = vmatpush1.msra.mxu0 0.0
    %170 = vmatprep.subr.mxu0 0.0
    %171 = vmatpush1.msra.mxu0 0.0
    %172 = vmatprep.subr.mxu0 0.0
    %173 = vmatpush1.msra.mxu0 0.0
    %174 = vmatprep.subr.mxu0 0.0
    %175 = vmatpush1.msra.mxu0 0.0
    %176 = vmatprep.subr.mxu0 0.0
    %177 = vmatpush1.msra.mxu0 0.0
    %178 = vmatprep.subr.mxu0 0.0
    %179 = vmatpush1.msra.mxu0 0.0
    %180 = vmatprep.subr.mxu0 0.0
    %181 = vmatpush1.msra.mxu0 0.0
    %182 = vmatprep.mubr.f32.mxu0 0.0
    %183 = vmatmul.mubr.f32.gmra.mrb[0].mxu0 %v113
    %v184 = vpop.f32.mrb[0].mxu0
    %v185 = vadd.f32 0.0, %v184
    %v186 = vpop.f32.mrb[0].mxu0
    %187 = vmatprep.mubr.f32.mxu0 0.0
    %188 = vmatmul.mubr.f32.gmra.mrb[0].mxu0 %v116
    %v189 = vpop.f32.mrb[0].mxu0
    %v190 = vadd.f32 0.0, %v189
    %v191 = vpop.f32.mrb[0].mxu0
    %192 = vdwg.mxu0
    %v195 = vunpack.c.l.s4 1966171168
    %v196 = vunpack.c.0.s8 %v195
    %v197 = vlaneseq
    %v198 = vshrl.u32 %v197, 7
    %v199 = vsub.s32 %v196, %v198
    %v200 = vrot.slane %v109, %v199
    %v201 = vcombine.high %v200, %v200
    %v203 = vunpack.c.l.s4 1966171168
    %v204 = vunpack.c.0.s8 %v203
    %v205 = vlaneseq
    %v206 = vshrl.u32 %v205, 7
    %v207 = vsub.s32 %v204, %v206
    %v208 = vrot.slane %v200, %v207
    %v210 = vunpack.c.l.s4 1966171168
    %v211 = vunpack.c.0.s8 %v210
    %v212 = vlaneseq
    %v213 = vshrl.u32 %v212, 7
    %v214 = vsub.s32 %v211, %v213
    %v215 = vrot.slane %v201, %v214
    %v216 = vlaneseq
    %v217 = vshrl.u32 %v216, 7
    %v218 = vsub.s32 0, %v217
    %v219 = vrot.slane %v208, %v218
    %v220 = vlaneseq
    %v221 = vshrl.u32 %v220, 7
    %v222 = vsub.s32 0, %v221
    %v223 = vrot.slane %v215, %v222
    %v226 = vadd.f32 %v185, %v219
    %v227 = vadd.f32 %v190, %v223
    %v228 = vtanh.pop %v226
    %v229 = vtanh.pop %v227
    %v230 = vlaneseq
    %v231 = vshrl.u32 %v230, 7
    %v232 = vsub.s32 0, %v231
    %v233 = vrot.slane %v33, %v232
    %v234 = vmul.f32 %v228, %v233
    %v235 = vmul.f32 %v229, %v233
    %v236 = vsel %vm38, %v234, 0.0
    %237 = vadd.xlane.f32.xlu0 %v236
    %v238 = vpop.xlane.xlu0 %237
    %v239 = vsel %vm38, %v235, 0.0
    %240 = vadd.xlane.f32.xlu0 %v239
    %v241 = vpop.xlane.xlu0 %240
    %v244 = vlaneseq
    %v245 = vand.u32 %v244, 127
    %v246 = vlaneseq
    %v247 = vshrl.u32 %v246, 7
    %v248 = vsub.s32 %v245, %v247
    %v249 = vrot.slane %v238, %v248
    %v250 = vlaneseq
    %v251 = vshrl.u32 %v250, 7
    %v252 = vsub.s32 %v245, %v251
    %v253 = vrot.slane %v241, %v252
    %vm254 = vcmask 1041409
    %v255 = vsel %vm254, %v253, %v249
    %vm257 = vcmask 58368
    %v258 = vsel %vm257, %v255, -inf
    %259 = vmax.xlane.f32.xlu0 %v258
    %v260 = vpop.xlane.xlu0 %259
    %v262 = vlaneseq
    %v263 = vshrl.u32 %v262, 7
    %v264 = vsub.s32 0, %v263
    %v265 = vrot.slane %v260, %v264
    %v266 = vlaneseq
    %v267 = vshrl.u32 %v266, 7
    %v268 = vsub.s32 1, %v267
    %v269 = vrot.slane %v260, %v268
    %v272 = vsub.f32 %v238, %v265
    %v273 = vsub.f32 %v241, %v269
    %v274 = vmul.f32 %v272, 1.442695
    %v275 = vpow.pop %v274
    %v276 = vmul.f32 %v273, 1.442695
    %v277 = vpow.pop %v276
    %280 = vset.pattern.permute.xlu0 0
    %281 = vperm.xlu0 %280, %v275
    %v282 = vpop.permute.xlu0 %281
    %283 = vset.pattern.permute.xlu0 0
    %284 = vperm.xlu0 %283, %v277
    %v285 = vpop.permute.xlu0 %284
    %v286 = vlaneseq
    %v287 = vshrl.u32 %v286, 7
    %v288 = vsub.s32 %v245, %v287
    %v289 = vrot.slane %v282, %v288
    %v290 = vlaneseq
    %v291 = vshrl.u32 %v290, 7
    %v292 = vsub.s32 %v245, %v291
    %v293 = vrot.slane %v285, %v292
    %v294 = vsel %vm254, %v293, %v289
    %v296 = vsel %vm257, %v294, 0.0
    %297 = vadd.xlane.f32.xlu0 %v296
    %v298 = vpop.xlane.xlu0 %297
    %v299 = vrcp.pop %v298
    %v301 = vlaneseq
    %v302 = vshrl.u32 %v301, 7
    %v303 = vsub.s32 0, %v302
    %v304 = vrot.slane %v299, %v303
    %v305 = vlaneseq
    %v306 = vshrl.u32 %v305, 7
    %v307 = vsub.s32 1, %v306
    %v308 = vrot.slane %v299, %v307
    %v311 = vmul.f32 %v275, %v304
    %v312 = vmul.f32 %v277, %v308
    %314 = vset.pattern.permute.xlu0 0
    %315 = vperm.xlu0 %314, %v311
    %v316 = vpop.permute.xlu0 %315
    %319 = vset.pattern.permute.xlu0 0
    %320 = vperm.xlu0 %319, %v312
    %v321 = vpop.permute.xlu0 %320
    %v323 = vmul.f32 %v316, %v22
    %v324 = vmul.f32 %v321, %v23
    %v325 = vsel %vm38, %v323, 0.0
    %v326 = vrot.slane %v325, 4
    %v327 = vadd.f32 %v325, %v326
    %v328 = vrot.slane %v327, 2
    %v329 = vadd.f32 %v327, %v328
    %v330 = vrot.slane %v329, 1
    %v331 = vadd.f32 %v329, %v330
    %v332 = vsel %vm38, %v324, 0.0
    %v333 = vrot.slane %v332, 4
    %v334 = vadd.f32 %v332, %v333
    %v335 = vrot.slane %v334, 2
    %v336 = vadd.f32 %v334, %v335
    %v337 = vrot.slane %v336, 1
    %v338 = vadd.f32 %v336, %v337
    %v341 = vsel %vm254, %v338, %v331
    %vm343 = vcmask 254976
    %344 = vst.msk [vmem:[#allocation2] sm:$0x3] %vm343, %v341
    %v345 = vlaneseq
    %v346 = vshrl.u32 %v345, 7
    %v347 = vsub.s32 %v245, %v346
    %v348 = vrot.slane %v316, %v347
    %v349 = vlaneseq
    %v350 = vshrl.u32 %v349, 7
    %v351 = vsub.s32 %v245, %v350
    %v352 = vrot.slane %v321, %v351
    %v353 = vsel %vm254, %v352, %v348
    %355 = vst.msk [vmem:[#allocation4] sm:$0x3] %vm257, %v353
    // Predicated region
    $region18: #{tpu_custom_call.1} parent=1 // pred_check
      _
    $region19: #{tpu_custom_call.1} parent=1 // pred_check_branch
      %357 = sbr.rel (0) target = $region21
    $region20: #{tpu_custom_call.1} parent=1 // pred_region
      %s359 = ssub.s32 32, 32
      %360 = vsyncadd [#allocation3], %s359
      %s362 = sshll.u32 [#allocation2], 4
      %s363 = int_to_ptr.vmem [resolvable:$true] %s362
      %365 = dma.vmem_to_hbm [thread:$0]  %s363, 32, %s4, [#allocation3]
    $region21: #{tpu_custom_call.1} parent=1 // pred_fallthru
      _
    // Predicated region
    $region22: #{tpu_custom_call.1} parent=1 // pred_check
      _
    $region23: #{tpu_custom_call.1} parent=1 // pred_check_branch
      %367 = sbr.rel (0) target = $region25
    $region24: #{tpu_custom_call.1} parent=1 // pred_region
      %s369 = ssub.s32 32, 32
      %370 = vsyncadd [#allocation5], %s369
      %s372 = sshll.u32 [#allocation4], 4
      %s373 = int_to_ptr.vmem [resolvable:$true] %s372
      %375 = dma.vmem_to_hbm [thread:$0]  %s373, 32, %s5, [#allocation5]
    $region25: #{tpu_custom_call.1} parent=1 // pred_fallthru
      _
    // Predicated region
    $region26: #{tpu_custom_call.1} parent=1 // pred_check
      _
    $region27: #{tpu_custom_call.1} parent=1 // pred_check_branch
      %377 = sbr.rel (0) target = $region29
    $region28: #{tpu_custom_call.1} parent=1 // pred_region
      %378 = dma.done [#allocation3], 32
    $region29: #{tpu_custom_call.1} parent=1 // pred_fallthru
      _
    // Predicated region
    $region30: #{tpu_custom_call.1} parent=1 // pred_check
      _
    $region31: #{tpu_custom_call.1} parent=1 // pred_check_branch
      %380 = sbr.rel (0) target = $region33
    $region32: #{tpu_custom_call.1} parent=1 // pred_region
      %381 = dma.done [#allocation5], 32
    $region33: #{tpu_custom_call.1} parent=1 // pred_fallthru
      _
    %382 = vsyncpa [#allocation3], 1
    %383 = vsyncpa [#allocation5], 1

</llo_original>
